<compile_context>
chip_gen: v5e
topology: v5e:2x2
jax: 0.10.0
libtpu: 0.0.40
codegen_flags: <defaults>
</compile_context>

<pallas_src>
import functools
import math

import jax
import jax.numpy as jnp
from jax.experimental import pallas as pl
from jax.experimental.pallas import tpu as pltpu


_INV_SQRT_2PI = 0.3989422804014327   # 1/sqrt(2*pi)
_INV_SQRT_2 = 0.7071067811865476     # 1/sqrt(2)


def flow1d_kernel(n_components, params_ref, x_ref, z_ref, logdz_ref):
    """One (TM, 128) tile of flattened x -> (z, log dz/dx) tiles.

    params_ref is a flat (4*K,) f32 SMEM vector (scalar-prefetched once before
    the grid runs) holding precomputed per-component scalars, laid out as
      [mu_0..mu_{K-1} | a_0.. | b_0.. | c_0..] with
        a_k = 0.5 * w_k
        b_k = w_k / (sigma_k * sqrt(2*pi))
        c_k = 1 / (sigma_k * sqrt(2))
    """
    K = n_components
    x = x_ref[...]

    # sum_k w_k * 0.5*(1 + erf(u_k)) == 0.5 + sum_k a_k * erf(u_k)
    z = jnp.full_like(x, 0.5)
    dz = jnp.zeros_like(x)

    # Unrolled mixture reduction over K components (K is small & static).
    for k in range(K):
        mu = params_ref[k]
        a = params_ref[K + k]
        b = params_ref[2 * K + k]
        c = params_ref[3 * K + k]
        u = (x - mu) * c
        z = z + a * jax.lax.erf(u)            # VPU polynomial
        dz = dz + b * jnp.exp(-(u * u))       # exp rides the EUP slot (free)

    z_ref[...] = z
    logdz_ref[...] = jnp.log(dz)


def _ceil_to(v, m):
    return -(-v // m) * m


@functools.lru_cache(maxsize=1)
def _tpu_generation():
    """(tensorcores_per_device, scoped_vmem_cap_bytes), with safe fallbacks."""
    num_tc = 1
    vmem_cap = 32 << 20                       # conservative (v7x scoped default)
    try:
        kind = jax.devices()[0].device_kind.lower()
    except Exception:
        kind = ""
    if any(tag in kind for tag in ("v4", "v5p", "7")):
        num_tc = 2                            # megacore / dual-TC generations
    if "7" not in kind:
        vmem_cap = 64 << 20                   # v5e/v6e: 128 MiB physical VMEM
    try:
        info = pltpu.get_tpu_info()
        cap = getattr(info, "vmem_capacity_bytes", None)
        if cap:
            vmem_cap = min(vmem_cap, int(cap) // 2)   # stay <= half physical
    except Exception:
        pass
    return num_tc, vmem_cap


def _pick_tile_rows(rows8, num_tc, max_tm):
    """Row-tile size (multiple of 8). rows8 is already a multiple of 8."""
    if num_tc <= 1:
        # Single TensorCore: the grid is a serial loop; splitting small inputs
        # only adds ~0.35 us of pipeline-restart overhead per extra step.
        return min(rows8, max_tm)
    # Dual-TC: aim for >= 2 grid steps per core so each core still
    # double-buffers its input DMA; degrade gracefully for small inputs.
    for steps in (2 * num_tc, num_tc):
        tm = (rows8 // steps // 8) * 8
        if tm >= 8:
            return min(tm, max_tm)
    return min(rows8, max_tm)


def flow1d_forward(x, mus, log_sigmas, weight_logits, *, lane=128, max_tm=2048):
    """Pallas-backed Flow1d forward. Returns (z, log_dz_by_dx), each (N, 1)."""
    n_components = mus.shape[0]
    x_flat = x.reshape(-1).astype(jnp.float32)
    n = x_flat.shape[0]

    num_tc, vmem_cap = _tpu_generation()

    # ---- lane-dense slab layout (rows, 128), rows padded to a multiple of 8 --
    rows = -(-n // lane)
    rows8 = _ceil_to(rows, 8)
    tm = _pick_tile_rows(rows8, num_tc, max_tm)
    rows_pad = _ceil_to(rows8, tm)
    n_pad = rows_pad * lane
    if n_pad != n:
        # TODO(synk): when N isn't (8*128)-aligned this pad (and the slices
        # below) are un-hidden HBM copies; peak-perf callers should keep the
        # flatten/pad fused with the upstream producer or consume the padded slab.
        x_flat = jnp.pad(x_flat, (0, n_pad - n))
    x2d = x_flat.reshape(rows_pad, lane)
    grid = (rows_pad // tm,)

    # ---- hoist all per-component scalar work out of the kernel --------------
    w = jax.nn.softmax(weight_logits.astype(jnp.float32))
    inv_sigma = jnp.exp(-log_sigmas.astype(jnp.float32))
    params = jnp.concatenate([
        mus.astype(jnp.float32),                              # mu_k
        0.5 * w,                                              # a_k (erf coeff)
        w * inv_sigma * jnp.float32(_INV_SQRT_2PI),           # b_k (pdf coeff)
        inv_sigma * jnp.float32(_INV_SQRT_2),                 # c_k = 1/(sigma*sqrt2)
    ]).astype(jnp.float32)

    tile_spec = pl.BlockSpec((tm, lane), lambda i, params_ref: (i, 0))

    # Generation-aware VMEM budget: (1 input + 2 outputs) x double-buffer x 2x
    # headroom, capped at the scoped limit for this chip generation.
    tile_bytes = tm * lane * 4
    vmem_budget = min(vmem_cap, max(4 << 20, 2 * 3 * 2 * tile_bytes))

    kernel = functools.partial(flow1d_kernel, n_components)
    z2d, logdz2d = pl.pallas_call(
        kernel,
        out_shape=(jax.ShapeDtypeStruct((rows_pad, lane), jnp.float32),
                   jax.ShapeDtypeStruct((rows_pad, lane), jnp.float32)),
        grid_spec=pltpu.PrefetchScalarGridSpec(
            num_scalar_prefetch=1,          # params -> SMEM, once, before the grid
            grid=grid,
            in_specs=[tile_spec],
            out_specs=[tile_spec, tile_spec],
        ),
        compiler_params=pltpu.CompilerParams(
            dimension_semantics=("parallel",),
            vmem_limit_bytes=vmem_budget),
    )(params, x2d)

    z = z2d.reshape(n_pad, 1)
    logdz = logdz2d.reshape(n_pad, 1)
    if n_pad != n:
        z = z[:n]
        logdz = logdz[:n]
    return z, logdz


def flow1d_reference(x, mus, log_sigmas, weight_logits):
    """Pure-JAX reference mirroring the PyTorch module."""
    xf = x.reshape(-1, 1).astype(jnp.float32)
    w = jax.nn.softmax(weight_logits.astype(jnp.float32)).reshape(1, -1)
    sigma = jnp.exp(log_sigmas.astype(jnp.float32))
    t = (xf - mus.astype(jnp.float32)) / sigma
    cdf = 0.5 * (1.0 + jax.lax.erf(t / jnp.sqrt(2.0)))
    pdf = jnp.exp(-0.5 * t * t) / (sigma * jnp.sqrt(2.0 * jnp.pi))
    z = jnp.sum(w * cdf, axis=1, keepdims=True)
    dz = jnp.sum(w * pdf, axis=1, keepdims=True)
    return z, jnp.log(dz)


if __name__ == "__main__":
    key = jax.random.PRNGKey(0)
    k_mus, k_x = jax.random.split(key)

    n_components = 4
    # Deterministic parameter init matching the module's __init__ shapes:
    #   mus ~ randn(K), log_sigmas = zeros(K), weight_logits = ones(K)
    mus = jax.random.normal(k_mus, (n_components,), dtype=jnp.float32)
    log_sigmas = jnp.zeros((n_components,), dtype=jnp.float32)
    weight_logits = jnp.ones((n_components,), dtype=jnp.float32)

    # Small NCHW-ish input; forward just flattens it. 2*4*16*16 = 2048 elements
    # is (8*128)-aligned, so the wrapper does no pad and no output-slice copies.
    x = jax.random.normal(k_x, (2, 4, 16, 16), dtype=jnp.float32)

    fwd = jax.jit(flow1d_forward)
    z, log_dz = fwd(x, mus, log_sigmas, weight_logits)
    jax.block_until_ready((z, log_dz))

    z_ref, log_dz_ref = flow1d_reference(x, mus, log_sigmas, weight_logits)
    assert z.shape == (x.size, 1) and log_dz.shape == (x.size, 1)
    assert jnp.allclose(z, z_ref, atol=1e-5, rtol=1e-5)
    assert jnp.allclose(log_dz, log_dz_ref, atol=1e-5, rtol=1e-5)

    # TODO(synk): log(dz) can still underflow to -inf for extreme-tail x, matching
    # the PyTorch reference; a log-sum-exp accumulation would be more robust.

    print("KERNEL_OK")
</pallas_src>

<mosaic_0001>
module attributes {stable_mosaic.version = 11 : i64} {
  func.func @flow1d_kernel(%arg0: i32, %arg1: memref<16xf32, #tpu.memory_space<smem>>, %arg2: memref<16x128xf32, #tpu.memory_space<vmem>>, %arg3: memref<16x128xf32, #tpu.memory_space<vmem>>, %arg4: memref<16x128xf32, #tpu.memory_space<vmem>>) attributes {dimension_semantics = [#tpu.dimension_semantics<parallel>], iteration_bounds = array<i64: 1>, scalar_prefetch = 1 : i64, scratch_operands = 0 : i64, tpu.core_type = #tpu.core_type<tc>, window_params = [{transform_indices = @transform_0, window_bounds = array<i64: 16, 128>}, {transform_indices = @transform_1, window_bounds = array<i64: 16, 128>}, {transform_indices = @transform_2, window_bounds = array<i64: 16, 128>}]} {
    %c0 = arith.constant 0 : index
    %c0_0 = arith.constant 0 : index
    %0 = vector.load %arg2[%c0, %c0_0] : memref<16x128xf32, #tpu.memory_space<vmem>>, vector<16x128xf32>
    %cst = arith.constant 5.000000e-01 : f32
    %1 = vector.broadcast %cst : f32 to vector<16x128xf32>
    %cst_1 = arith.constant 0.000000e+00 : f32
    %2 = vector.broadcast %cst_1 : f32 to vector<16x128xf32>
    %c0_2 = arith.constant 0 : index
    %3 = memref.load %arg1[%c0_2] : memref<16xf32, #tpu.memory_space<smem>>
    %c4 = arith.constant 4 : index
    %4 = memref.load %arg1[%c4] : memref<16xf32, #tpu.memory_space<smem>>
    %c8 = arith.constant 8 : index
    %5 = memref.load %arg1[%c8] : memref<16xf32, #tpu.memory_space<smem>>
    %c12 = arith.constant 12 : index
    %6 = memref.load %arg1[%c12] : memref<16xf32, #tpu.memory_space<smem>>
    %7 = vector.broadcast %3 : f32 to vector<16x128xf32>
    %8 = arith.subf %0, %7 : vector<16x128xf32>
    %9 = vector.broadcast %6 : f32 to vector<16x128xf32>
    %10 = arith.mulf %8, %9 : vector<16x128xf32>
    %11 = math.erf %10 : vector<16x128xf32>
    %12 = vector.broadcast %4 : f32 to vector<16x128xf32>
    %13 = arith.mulf %12, %11 : vector<16x128xf32>
    %14 = arith.addf %1, %13 : vector<16x128xf32>
    %15 = arith.mulf %10, %10 : vector<16x128xf32>
    %cst_3 = arith.constant 0.000000e+00 : f32
    %16 = vector.broadcast %cst_3 : f32 to vector<16x128xf32>
    %17 = arith.subf %16, %15 : vector<16x128xf32>
    %18 = math.exp %17 : vector<16x128xf32>
    %19 = vector.broadcast %5 : f32 to vector<16x128xf32>
    %20 = arith.mulf %19, %18 : vector<16x128xf32>
    %21 = arith.addf %2, %20 : vector<16x128xf32>
    %c1 = arith.constant 1 : index
    %22 = memref.load %arg1[%c1] : memref<16xf32, #tpu.memory_space<smem>>
    %c5 = arith.constant 5 : index
    %23 = memref.load %arg1[%c5] : memref<16xf32, #tpu.memory_space<smem>>
    %c9 = arith.constant 9 : index
    %24 = memref.load %arg1[%c9] : memref<16xf32, #tpu.memory_space<smem>>
    %c13 = arith.constant 13 : index
    %25 = memref.load %arg1[%c13] : memref<16xf32, #tpu.memory_space<smem>>
    %26 = vector.broadcast %22 : f32 to vector<16x128xf32>
    %27 = arith.subf %0, %26 : vector<16x128xf32>
    %28 = vector.broadcast %25 : f32 to vector<16x128xf32>
    %29 = arith.mulf %27, %28 : vector<16x128xf32>
    %30 = math.erf %29 : vector<16x128xf32>
    %31 = vector.broadcast %23 : f32 to vector<16x128xf32>
    %32 = arith.mulf %31, %30 : vector<16x128xf32>
    %33 = arith.addf %14, %32 : vector<16x128xf32>
    %34 = arith.mulf %29, %29 : vector<16x128xf32>
    %cst_4 = arith.constant 0.000000e+00 : f32
    %35 = vector.broadcast %cst_4 : f32 to vector<16x128xf32>
    %36 = arith.subf %35, %34 : vector<16x128xf32>
    %37 = math.exp %36 : vector<16x128xf32>
    %38 = vector.broadcast %24 : f32 to vector<16x128xf32>
    %39 = arith.mulf %38, %37 : vector<16x128xf32>
    %40 = arith.addf %21, %39 : vector<16x128xf32>
    %c2 = arith.constant 2 : index
    %41 = memref.load %arg1[%c2] : memref<16xf32, #tpu.memory_space<smem>>
    %c6 = arith.constant 6 : index
    %42 = memref.load %arg1[%c6] : memref<16xf32, #tpu.memory_space<smem>>
    %c10 = arith.constant 10 : index
    %43 = memref.load %arg1[%c10] : memref<16xf32, #tpu.memory_space<smem>>
    %c14 = arith.constant 14 : index
    %44 = memref.load %arg1[%c14] : memref<16xf32, #tpu.memory_space<smem>>
    %45 = vector.broadcast %41 : f32 to vector<16x128xf32>
    %46 = arith.subf %0, %45 : vector<16x128xf32>
    %47 = vector.broadcast %44 : f32 to vector<16x128xf32>
    %48 = arith.mulf %46, %47 : vector<16x128xf32>
    %49 = math.erf %48 : vector<16x128xf32>
    %50 = vector.broadcast %42 : f32 to vector<16x128xf32>
    %51 = arith.mulf %50, %49 : vector<16x128xf32>
    %52 = arith.addf %33, %51 : vector<16x128xf32>
    %53 = arith.mulf %48, %48 : vector<16x128xf32>
    %cst_5 = arith.constant 0.000000e+00 : f32
    %54 = vector.broadcast %cst_5 : f32 to vector<16x128xf32>
    %55 = arith.subf %54, %53 : vector<16x128xf32>
    %56 = math.exp %55 : vector<16x128xf32>
    %57 = vector.broadcast %43 : f32 to vector<16x128xf32>
    %58 = arith.mulf %57, %56 : vector<16x128xf32>
    %59 = arith.addf %40, %58 : vector<16x128xf32>
    %c3 = arith.constant 3 : index
    %60 = memref.load %arg1[%c3] : memref<16xf32, #tpu.memory_space<smem>>
    %c7 = arith.constant 7 : index
    %61 = memref.load %arg1[%c7] : memref<16xf32, #tpu.memory_space<smem>>
    %c11 = arith.constant 11 : index
    %62 = memref.load %arg1[%c11] : memref<16xf32, #tpu.memory_space<smem>>
    %c15 = arith.constant 15 : index
    %63 = memref.load %arg1[%c15] : memref<16xf32, #tpu.memory_space<smem>>
    %64 = vector.broadcast %60 : f32 to vector<16x128xf32>
    %65 = arith.subf %0, %64 : vector<16x128xf32>
    %66 = vector.broadcast %63 : f32 to vector<16x128xf32>
    %67 = arith.mulf %65, %66 : vector<16x128xf32>
    %68 = math.erf %67 : vector<16x128xf32>
    %69 = vector.broadcast %61 : f32 to vector<16x128xf32>
    %70 = arith.mulf %69, %68 : vector<16x128xf32>
    %71 = arith.addf %52, %70 : vector<16x128xf32>
    %72 = arith.mulf %67, %67 : vector<16x128xf32>
    %cst_6 = arith.constant 0.000000e+00 : f32
    %73 = vector.broadcast %cst_6 : f32 to vector<16x128xf32>
    %74 = arith.subf %73, %72 : vector<16x128xf32>
    %75 = math.exp %74 : vector<16x128xf32>
    %76 = vector.broadcast %62 : f32 to vector<16x128xf32>
    %77 = arith.mulf %76, %75 : vector<16x128xf32>
    %78 = arith.addf %59, %77 : vector<16x128xf32>
    %c0_7 = arith.constant 0 : index
    %c0_8 = arith.constant 0 : index
    %79 = vector.load %arg3[%c0_7, %c0_8] : memref<16x128xf32, #tpu.memory_space<vmem>>, vector<16x128xf32>
    tpu.vector_store %arg3[%c0_7, %c0_8], %71 {strides = array<i32>} : memref<16x128xf32, #tpu.memory_space<vmem>>, vector<16x128xf32>,
    %80 = math.log %78 : vector<16x128xf32>
    %c0_9 = arith.constant 0 : index
    %c0_10 = arith.constant 0 : index
    %81 = vector.load %arg4[%c0_9, %c0_10] : memref<16x128xf32, #tpu.memory_space<vmem>>, vector<16x128xf32>
    tpu.vector_store %arg4[%c0_9, %c0_10], %80 {strides = array<i32>} : memref<16x128xf32, #tpu.memory_space<vmem>>, vector<16x128xf32>,
    return
  }
  func.func @transform_0(%arg0: i32, %arg1: memref<16xf32, #tpu.memory_space<smem>>) -> (i32, i32) {
    %c0_i32 = arith.constant 0 : i32
    %c0_i32_0 = arith.constant 0 : i32
    return %arg0, %c0_i32 : i32, i32
  }
  func.func @transform_1(%arg0: i32, %arg1: memref<16xf32, #tpu.memory_space<smem>>) -> (i32, i32) {
    %c0_i32 = arith.constant 0 : i32
    %c0_i32_0 = arith.constant 0 : i32
    return %arg0, %c0_i32 : i32, i32
  }
  func.func @transform_2(%arg0: i32, %arg1: memref<16xf32, #tpu.memory_space<smem>>) -> (i32, i32) {
    %c0_i32 = arith.constant 0 : i32
    %c0_i32_0 = arith.constant 0 : i32
    return %arg0, %c0_i32 : i32, i32
  }
}

</mosaic_0001>

<llo_original>
// kernel: flow1d_forward.1
$region0: #{flow1d_forward.1}
  #allocation0 [shape = 'u32[]', space=smem, size = 0x4, offset = 0x4, fixed_abs, tag = 'smem constant byte address 0x4 - core index']
  #allocation1 [shape = 'u32[72,128]{1,0:T(1,128)}', space=vmem, size = 0x9000, scoped, tag = 'internal scratch']
  #allocation2 [shape = 's32[1]{0}', space=sflag, size = 0x4, scoped, tag = 'scoped memory for flow1d_forward.1']
  #allocation3 [shape = 'u8[512]{0}', space=smem, size = 0x200, scoped, tag = 'prefetched SMEM operand 0']
  %s0 = inlined_call_operand.vmem [shape: f32[16], index: 0, kind: input, shape index: {}]
  %s1 = inlined_call_operand.vmem [shape: f32[16,128], index: 1, kind: input, shape index: {}]
  %s2 = inlined_call_operand.hbm [shape: f32[16,128], index: 2, kind: output, shape index: {0}]
  %s3 = inlined_call_operand.hbm [shape: f32[16,128], index: 3, kind: output, shape index: {1}]
  %4 = xla_tuple %s2, %s3
  %s5 = sld [smem:[#allocation0]]
  $region22: #{flow1d_forward.1} parent=0
    _
  %s7 = ssub.s32 1, %s5
  %s8 = scalar_select 0, %s7, %s5
  %s10 = sshll.u32 %s0, 4
  %s11 = int_to_ptr.vmem [resolvable:$true] %s10
  %13 = dma.vmem_to_smem %s11, 16, [#allocation3], [#allocation2]
  %15 = dma.done [#allocation2], 16
  %16 = sfence
  $region1: #{flow1d_forward.1} parent=0
    #allocation4 [shape = 'u8[8192]{0}', space=vmem, size = 0x2000, scoped, tag = 'output window, operand 0, single buffered']
    #allocation5 [shape = 's32[1]{0}', space=sflag, size = 0x4, scoped, tag = 'scoped memory for flow1d_forward.1']
    #allocation6 [shape = 'u8[8192]{0}', space=vmem, size = 0x2000, scoped, tag = 'output window, operand 1, single buffered']
    #allocation7 [shape = 's32[1]{0}', space=sflag, size = 0x4, scoped, tag = 'scoped memory for flow1d_forward.1']
    %17 = vsyncpa [#allocation5], 0
    %18 = vsyncpa [#allocation7], 0
    // Predicated region
    $region2: #{flow1d_forward.1} parent=1 // pred_check
      _
    $region3: #{flow1d_forward.1} parent=1 // pred_check_branch
      %20 = sbr.rel (0) target = $region5
    $region4: #{flow1d_forward.1} parent=1 // pred_region
      _
    $region5: #{flow1d_forward.1} parent=1 // pred_fallthru
      _
    %v21 = vld [vmem:[%s1] sm:$0xff]
    %v22 = vld [vmem:[%s1 + $0x8] sm:$0xff]
    %s23 = sld [smem:[#allocation3]]
    %s24 = sld [smem:[#allocation3 + $0x4]]
    %s25 = sld [smem:[#allocation3 + $0x8]]
    %s26 = sld [smem:[#allocation3 + $0xc]]
    %v27 = vstv %s23
    %v28 = vsub.f32 %v21, %v27
    %v29 = vsub.f32 %v22, %v27
    %v30 = vstv %s26
    %v31 = vmul.f32 %v28, %v30
    %v32 = vmul.f32 %v29, %v30
    %v33 = vmul.f32 %v31, %v31
    %v34 = vmin.f32 16.0, %v33
    %v35 = vmul.f32 %v34, 2.1237322e-06
    %v36 = vadd.f32 %v35, 0.00028619796
    %v37 = vmul.f32 %v34, %v36
    %v38 = vadd.f32 %v37, 0.0036580483
    %v39 = vmul.f32 %v34, %v38
    %v40 = vadd.f32 %v39, 0.05243302
    %v41 = vmul.f32 %v34, %v40
    %v42 = vadd.f32 %v41, 0.18741608
    %v43 = vmul.f32 %v34, %v42
    %v44 = vadd.f32 %v43, 1.1283791
    %v45 = vmul.f32 %v31, %v44
    %v46 = vmul.f32 %v34, 3.8918573e-05
    %v47 = vadd.f32 %v46, 0.001143296
    %v48 = vmul.f32 %v34, %v47
    %v49 = vadd.f32 %v48, 0.014752088
    %v50 = vmul.f32 %v34, %v49
    %v51 = vadd.f32 %v50, 0.112945676
    %v52 = vmul.f32 %v34, %v51
    %v53 = vadd.f32 %v52, 0.4994258
    %v54 = vmul.f32 %v34, %v53
    %v55 = vadd.f32 %v54, 1.0
    %v56 = vrcp.pop %v55
    %v57 = vmul.f32 %v55, %v56
    %v58 = vsub.f32 1.0, %v57
    %v59 = vmul.f32 %v56, %v58
    %v60 = vadd.f32 %v56, %v59
    %vm61 = vweird.f32 %v55
    %vm62 = vweird.f32 %v56
    %vm63 = vmor %vm61, %vm62
    %v64 = vsel %vm63, %v56, %v60
    %v65 = vand.u32 2147483647, %v55
    %vm66 = vcmp.eq.f32.partialorder %v65, 8.507059e+37
    %v67 = vand.u32 %v55, 2147483648
    %v68 = vor.u32 1.1754944e-38, %v67
    %v69 = vsel %vm66, %v68, %v64
    %v70 = vmul.f32 %v45, %v69
    %v71 = vmin.f32 %v70, 1.0
    %v72 = vmax.f32 %v71, -1.0
    %v73 = vmul.f32 %v32, %v32
    %v74 = vmin.f32 16.0, %v73
    %v75 = vmul.f32 %v74, 2.1237322e-06
    %v76 = vadd.f32 %v75, 0.00028619796
    %v77 = vmul.f32 %v74, %v76
    %v78 = vadd.f32 %v77, 0.0036580483
    %v79 = vmul.f32 %v74, %v78
    %v80 = vadd.f32 %v79, 0.05243302
    %v81 = vmul.f32 %v74, %v80
    %v82 = vadd.f32 %v81, 0.18741608
    %v83 = vmul.f32 %v74, %v82
    %v84 = vadd.f32 %v83, 1.1283791
    %v85 = vmul.f32 %v32, %v84
    %v86 = vmul.f32 %v74, 3.8918573e-05
    %v87 = vadd.f32 %v86, 0.001143296
    %v88 = vmul.f32 %v74, %v87
    %v89 = vadd.f32 %v88, 0.014752088
    %v90 = vmul.f32 %v74, %v89
    %v91 = vadd.f32 %v90, 0.112945676
    %v92 = vmul.f32 %v74, %v91
    %v93 = vadd.f32 %v92, 0.4994258
    %v94 = vmul.f32 %v74, %v93
    %v95 = vadd.f32 %v94, 1.0
    %v96 = vrcp.pop %v95
    %v97 = vmul.f32 %v95, %v96
    %v98 = vsub.f32 1.0, %v97
    %v99 = vmul.f32 %v96, %v98
    %v100 = vadd.f32 %v96, %v99
    %vm101 = vweird.f32 %v95
    %vm102 = vweird.f32 %v96
    %vm103 = vmor %vm101, %vm102
    %v104 = vsel %vm103, %v96, %v100
    %v105 = vand.u32 2147483647, %v95
    %vm106 = vcmp.eq.f32.partialorder %v105, 8.507059e+37
    %v107 = vand.u32 %v95, 2147483648
    %v108 = vor.u32 1.1754944e-38, %v107
    %v109 = vsel %vm106, %v108, %v104
    %v110 = vmul.f32 %v85, %v109
    %v111 = vmin.f32 %v110, 1.0
    %v112 = vmax.f32 %v111, -1.0
    %v113 = vstv %s24
    %v114 = vmul.f32 %v113, %v72
    %v115 = vmul.f32 %v113, %v112
    %v116 = vadd.f32 %v114, 0.5
    %v117 = vadd.f32 %v115, 0.5
    %v118 = vmul.f32 %v31, %v31
    %v119 = vmul.f32 %v32, %v32
    %v120 = vsub.f32 0.0, %v118
    %v121 = vsub.f32 0.0, %v119
    %v122 = vmul.f32 %v120, 1.442695
    %v123 = vpow.pop %v122
    %v124 = vmul.f32 %v121, 1.442695
    %v125 = vpow.pop %v124
    %v126 = vstv %s25
    %v127 = vmul.f32 %v126, %v123
    %v128 = vmul.f32 %v126, %v125
    %v129 = vadd.f32 %v127, 0.0
    %v130 = vadd.f32 %v128, 0.0
    %s131 = sld [smem:[#allocation3 + $0x1]]
    %s132 = sld [smem:[#allocation3 + $0x5]]
    %s133 = sld [smem:[#allocation3 + $0x9]]
    %s134 = sld [smem:[#allocation3 + $0xd]]
    %v135 = vstv %s131
    %v136 = vsub.f32 %v21, %v135
    %v137 = vsub.f32 %v22, %v135
    %v138 = vstv %s134
    %v139 = vmul.f32 %v136, %v138
    %v140 = vmul.f32 %v137, %v138
    %v141 = vmul.f32 %v139, %v139
    %v142 = vmin.f32 16.0, %v141
    %v143 = vmul.f32 %v142, 2.1237322e-06
    %v144 = vadd.f32 %v143, 0.00028619796
    %v145 = vmul.f32 %v142, %v144
    %v146 = vadd.f32 %v145, 0.0036580483
    %v147 = vmul.f32 %v142, %v146
    %v148 = vadd.f32 %v147, 0.05243302
    %v149 = vmul.f32 %v142, %v148
    %v150 = vadd.f32 %v149, 0.18741608
    %v151 = vmul.f32 %v142, %v150
    %v152 = vadd.f32 %v151, 1.1283791
    %v153 = vmul.f32 %v139, %v152
    %v154 = vmul.f32 %v142, 3.8918573e-05
    %v155 = vadd.f32 %v154, 0.001143296
    %v156 = vmul.f32 %v142, %v155
    %v157 = vadd.f32 %v156, 0.014752088
    %v158 = vmul.f32 %v142, %v157
    %v159 = vadd.f32 %v158, 0.112945676
    %v160 = vmul.f32 %v142, %v159
    %v161 = vadd.f32 %v160, 0.4994258
    %v162 = vmul.f32 %v142, %v161
    %v163 = vadd.f32 %v162, 1.0
    %v164 = vrcp.pop %v163
    %v165 = vmul.f32 %v163, %v164
    %v166 = vsub.f32 1.0, %v165
    %v167 = vmul.f32 %v164, %v166
    %v168 = vadd.f32 %v164, %v167
    %vm169 = vweird.f32 %v163
    %vm170 = vweird.f32 %v164
    %vm171 = vmor %vm169, %vm170
    %v172 = vsel %vm171, %v164, %v168
    %v173 = vand.u32 2147483647, %v163
    %vm174 = vcmp.eq.f32.partialorder %v173, 8.507059e+37
    %v175 = vand.u32 %v163, 2147483648
    %v176 = vor.u32 1.1754944e-38, %v175
    %v177 = vsel %vm174, %v176, %v172
    %v178 = vmul.f32 %v153, %v177
    %v179 = vmin.f32 %v178, 1.0
    %v180 = vmax.f32 %v179, -1.0
    %v181 = vmul.f32 %v140, %v140
    %v182 = vmin.f32 16.0, %v181
    %v183 = vmul.f32 %v182, 2.1237322e-06
    %v184 = vadd.f32 %v183, 0.00028619796
    %v185 = vmul.f32 %v182, %v184
    %v186 = vadd.f32 %v185, 0.0036580483
    %v187 = vmul.f32 %v182, %v186
    %v188 = vadd.f32 %v187, 0.05243302
    %v189 = vmul.f32 %v182, %v188
    %v190 = vadd.f32 %v189, 0.18741608
    %v191 = vmul.f32 %v182, %v190
    %v192 = vadd.f32 %v191, 1.1283791
    %v193 = vmul.f32 %v140, %v192
    %v194 = vmul.f32 %v182, 3.8918573e-05
    %v195 = vadd.f32 %v194, 0.001143296
    %v196 = vmul.f32 %v182, %v195
    %v197 = vadd.f32 %v196, 0.014752088
    %v198 = vmul.f32 %v182, %v197
    %v199 = vadd.f32 %v198, 0.112945676
    %v200 = vmul.f32 %v182, %v199
    %v201 = vadd.f32 %v200, 0.4994258
    %v202 = vmul.f32 %v182, %v201
    %v203 = vadd.f32 %v202, 1.0
    %v204 = vrcp.pop %v203
    %v205 = vmul.f32 %v203, %v204
    %v206 = vsub.f32 1.0, %v205
    %v207 = vmul.f32 %v204, %v206
    %v208 = vadd.f32 %v204, %v207
    %vm209 = vweird.f32 %v203
    %vm210 = vweird.f32 %v204
    %vm211 = vmor %vm209, %vm210
    %v212 = vsel %vm211, %v204, %v208
    %v213 = vand.u32 2147483647, %v203
    %vm214 = vcmp.eq.f32.partialorder %v213, 8.507059e+37
    %v215 = vand.u32 %v203, 2147483648
    %v216 = vor.u32 1.1754944e-38, %v215
    %v217 = vsel %vm214, %v216, %v212
    %v218 = vmul.f32 %v193, %v217
    %v219 = vmin.f32 %v218, 1.0
    %v220 = vmax.f32 %v219, -1.0
    %v221 = vstv %s132
    %v222 = vmul.f32 %v221, %v180
    %v223 = vmul.f32 %v221, %v220
    %v224 = vadd.f32 %v116, %v222
    %v225 = vadd.f32 %v117, %v223
    %v226 = vmul.f32 %v139, %v139
    %v227 = vmul.f32 %v140, %v140
    %v228 = vsub.f32 0.0, %v226
    %v229 = vsub.f32 0.0, %v227
    %v230 = vmul.f32 %v228, 1.442695
    %v231 = vpow.pop %v230
    %v232 = vmul.f32 %v229, 1.442695
    %v233 = vpow.pop %v232
    %v234 = vstv %s133
    %v235 = vmul.f32 %v234, %v231
    %v236 = vmul.f32 %v234, %v233
    %v237 = vadd.f32 %v129, %v235
    %v238 = vadd.f32 %v130, %v236
    %s239 = sld [smem:[#allocation3 + $0x2]]
    %s240 = sld [smem:[#allocation3 + $0x6]]
    %s241 = sld [smem:[#allocation3 + $0xa]]
    %s242 = sld [smem:[#allocation3 + $0xe]]
    %v243 = vstv %s239
    %v244 = vsub.f32 %v21, %v243
    %v245 = vsub.f32 %v22, %v243
    %v246 = vstv %s242
    %v247 = vmul.f32 %v244, %v246
    %v248 = vmul.f32 %v245, %v246
    %v249 = vmul.f32 %v247, %v247
    %v250 = vmin.f32 16.0, %v249
    %v251 = vmul.f32 %v250, 2.1237322e-06
    %v252 = vadd.f32 %v251, 0.00028619796
    %v253 = vmul.f32 %v250, %v252
    %v254 = vadd.f32 %v253, 0.0036580483
    %v255 = vmul.f32 %v250, %v254
    %v256 = vadd.f32 %v255, 0.05243302
    %v257 = vmul.f32 %v250, %v256
    %v258 = vadd.f32 %v257, 0.18741608
    %v259 = vmul.f32 %v250, %v258
    %v260 = vadd.f32 %v259, 1.1283791
    %v261 = vmul.f32 %v247, %v260
    %v262 = vmul.f32 %v250, 3.8918573e-05
    %v263 = vadd.f32 %v262, 0.001143296
    %v264 = vmul.f32 %v250, %v263
    %v265 = vadd.f32 %v264, 0.014752088
    %v266 = vmul.f32 %v250, %v265
    %v267 = vadd.f32 %v266, 0.112945676
    %v268 = vmul.f32 %v250, %v267
    %v269 = vadd.f32 %v268, 0.4994258
    %v270 = vmul.f32 %v250, %v269
    %v271 = vadd.f32 %v270, 1.0
    %v272 = vrcp.pop %v271
    %v273 = vmul.f32 %v271, %v272
    %v274 = vsub.f32 1.0, %v273
    %v275 = vmul.f32 %v272, %v274
    %v276 = vadd.f32 %v272, %v275
    %vm277 = vweird.f32 %v271
    %vm278 = vweird.f32 %v272
    %vm279 = vmor %vm277, %vm278
    %v280 = vsel %vm279, %v272, %v276
    %v281 = vand.u32 2147483647, %v271
    %vm282 = vcmp.eq.f32.partialorder %v281, 8.507059e+37
    %v283 = vand.u32 %v271, 2147483648
    %v284 = vor.u32 1.1754944e-38, %v283
    %v285 = vsel %vm282, %v284, %v280
    %v286 = vmul.f32 %v261, %v285
    %v287 = vmin.f32 %v286, 1.0
    %v288 = vmax.f32 %v287, -1.0
    %v289 = vmul.f32 %v248, %v248
    %v290 = vmin.f32 16.0, %v289
    %v291 = vmul.f32 %v290, 2.1237322e-06
    %v292 = vadd.f32 %v291, 0.00028619796
    %v293 = vmul.f32 %v290, %v292
    %v294 = vadd.f32 %v293, 0.0036580483
    %v295 = vmul.f32 %v290, %v294
    %v296 = vadd.f32 %v295, 0.05243302
    %v297 = vmul.f32 %v290, %v296
    %v298 = vadd.f32 %v297, 0.18741608
    %v299 = vmul.f32 %v290, %v298
    %v300 = vadd.f32 %v299, 1.1283791
    %v301 = vmul.f32 %v248, %v300
    %v302 = vmul.f32 %v290, 3.8918573e-05
    %v303 = vadd.f32 %v302, 0.001143296
    %v304 = vmul.f32 %v290, %v303
    %v305 = vadd.f32 %v304, 0.014752088
    %v306 = vmul.f32 %v290, %v305
    %v307 = vadd.f32 %v306, 0.112945676
    %v308 = vmul.f32 %v290, %v307
    %v309 = vadd.f32 %v308, 0.4994258
    %v310 = vmul.f32 %v290, %v309
    %v311 = vadd.f32 %v310, 1.0
    %v312 = vrcp.pop %v311
    %v313 = vmul.f32 %v311, %v312
    %v314 = vsub.f32 1.0, %v313
    %v315 = vmul.f32 %v312, %v314
    %v316 = vadd.f32 %v312, %v315
    %vm317 = vweird.f32 %v311
    %vm318 = vweird.f32 %v312
    %vm319 = vmor %vm317, %vm318
    %v320 = vsel %vm319, %v312, %v316
    %v321 = vand.u32 2147483647, %v311
    %vm322 = vcmp.eq.f32.partialorder %v321, 8.507059e+37
    %v323 = vand.u32 %v311, 2147483648
    %v324 = vor.u32 1.1754944e-38, %v323
    %v325 = vsel %vm322, %v324, %v320
    %v326 = vmul.f32 %v301, %v325
    %v327 = vmin.f32 %v326, 1.0
    %v328 = vmax.f32 %v327, -1.0
    %v329 = vstv %s240
    %v330 = vmul.f32 %v329, %v288
    %v331 = vmul.f32 %v329, %v328
    %v332 = vadd.f32 %v224, %v330
    %v333 = vadd.f32 %v225, %v331
    %v334 = vmul.f32 %v247, %v247
    %v335 = vmul.f32 %v248, %v248
    %v336 = vsub.f32 0.0, %v334
    %v337 = vsub.f32 0.0, %v335
    %v338 = vmul.f32 %v336, 1.442695
    %v339 = vpow.pop %v338
    %v340 = vmul.f32 %v337, 1.442695
    %v341 = vpow.pop %v340
    %v342 = vstv %s241
    %v343 = vmul.f32 %v342, %v339
    %v344 = vmul.f32 %v342, %v341
    %v345 = vadd.f32 %v237, %v343
    %v346 = vadd.f32 %v238, %v344
    %s347 = sld [smem:[#allocation3 + $0x3]]
    %s348 = sld [smem:[#allocation3 + $0x7]]
    %s349 = sld [smem:[#allocation3 + $0xb]]
    %s350 = sld [smem:[#allocation3 + $0xf]]
    %v351 = vstv %s347
    %v352 = vsub.f32 %v21, %v351
    %v353 = vsub.f32 %v22, %v351
    %v354 = vstv %s350
    %v355 = vmul.f32 %v352, %v354
    %v356 = vmul.f32 %v353, %v354
    %v357 = vmul.f32 %v355, %v355
    %v358 = vmin.f32 16.0, %v357
    %v359 = vmul.f32 %v358, 2.1237322e-06
    %v360 = vadd.f32 %v359, 0.00028619796
    %v361 = vmul.f32 %v358, %v360
    %v362 = vadd.f32 %v361, 0.0036580483
    %v363 = vmul.f32 %v358, %v362
    %v364 = vadd.f32 %v363, 0.05243302
    %v365 = vmul.f32 %v358, %v364
    %v366 = vadd.f32 %v365, 0.18741608
    %v367 = vmul.f32 %v358, %v366
    %v368 = vadd.f32 %v367, 1.1283791
    %v369 = vmul.f32 %v355, %v368
    %v370 = vmul.f32 %v358, 3.8918573e-05
    %v371 = vadd.f32 %v370, 0.001143296
    %v372 = vmul.f32 %v358, %v371
    %v373 = vadd.f32 %v372, 0.014752088
    %v374 = vmul.f32 %v358, %v373
    %v375 = vadd.f32 %v374, 0.112945676
    %v376 = vmul.f32 %v358, %v375
    %v377 = vadd.f32 %v376, 0.4994258
    %v378 = vmul.f32 %v358, %v377
    %v379 = vadd.f32 %v378, 1.0
    %v380 = vrcp.pop %v379
    %v381 = vmul.f32 %v379, %v380
    %v382 = vsub.f32 1.0, %v381
    %v383 = vmul.f32 %v380, %v382
    %v384 = vadd.f32 %v380, %v383
    %vm385 = vweird.f32 %v379
    %vm386 = vweird.f32 %v380
    %vm387 = vmor %vm385, %vm386
    %v388 = vsel %vm387, %v380, %v384
    %v389 = vand.u32 2147483647, %v379
    %vm390 = vcmp.eq.f32.partialorder %v389, 8.507059e+37
    %v391 = vand.u32 %v379, 2147483648
    %v392 = vor.u32 1.1754944e-38, %v391
    %v393 = vsel %vm390, %v392, %v388
    %v394 = vmul.f32 %v369, %v393
    %v395 = vmin.f32 %v394, 1.0
    %v396 = vmax.f32 %v395, -1.0
    %v397 = vmul.f32 %v356, %v356
    %v398 = vmin.f32 16.0, %v397
    %v399 = vmul.f32 %v398, 2.1237322e-06
    %v400 = vadd.f32 %v399, 0.00028619796
    %v401 = vmul.f32 %v398, %v400
    %v402 = vadd.f32 %v401, 0.0036580483
    %v403 = vmul.f32 %v398, %v402
    %v404 = vadd.f32 %v403, 0.05243302
    %v405 = vmul.f32 %v398, %v404
    %v406 = vadd.f32 %v405, 0.18741608
    %v407 = vmul.f32 %v398, %v406
    %v408 = vadd.f32 %v407, 1.1283791
    %v409 = vmul.f32 %v356, %v408
    %v410 = vmul.f32 %v398, 3.8918573e-05
    %v411 = vadd.f32 %v410, 0.001143296
    %v412 = vmul.f32 %v398, %v411
    %v413 = vadd.f32 %v412, 0.014752088
    %v414 = vmul.f32 %v398, %v413
    %v415 = vadd.f32 %v414, 0.112945676
    %v416 = vmul.f32 %v398, %v415
    %v417 = vadd.f32 %v416, 0.4994258
    %v418 = vmul.f32 %v398, %v417
    %v419 = vadd.f32 %v418, 1.0
    %v420 = vrcp.pop %v419
    %v421 = vmul.f32 %v419, %v420
    %v422 = vsub.f32 1.0, %v421
    %v423 = vmul.f32 %v420, %v422
    %v424 = vadd.f32 %v420, %v423
    %vm425 = vweird.f32 %v419
    %vm426 = vweird.f32 %v420
    %vm427 = vmor %vm425, %vm426
    %v428 = vsel %vm427, %v420, %v424
    %v429 = vand.u32 2147483647, %v419
    %vm430 = vcmp.eq.f32.partialorder %v429, 8.507059e+37
    %v431 = vand.u32 %v419, 2147483648
    %v432 = vor.u32 1.1754944e-38, %v431
    %v433 = vsel %vm430, %v432, %v428
    %v434 = vmul.f32 %v409, %v433
    %v435 = vmin.f32 %v434, 1.0
    %v436 = vmax.f32 %v435, -1.0
    %v437 = vstv %s348
    %v438 = vmul.f32 %v437, %v396
    %v439 = vmul.f32 %v437, %v436
    %v440 = vadd.f32 %v332, %v438
    %v441 = vadd.f32 %v333, %v439
    %v442 = vmul.f32 %v355, %v355
    %v443 = vmul.f32 %v356, %v356
    %v444 = vsub.f32 0.0, %v442
    %v445 = vsub.f32 0.0, %v443
    %v446 = vmul.f32 %v444, 1.442695
    %v447 = vpow.pop %v446
    %v448 = vmul.f32 %v445, 1.442695
    %v449 = vpow.pop %v448
    %v450 = vstv %s349
    %v451 = vmul.f32 %v450, %v447
    %v452 = vmul.f32 %v450, %v449
    %v453 = vadd.f32 %v345, %v451
    %v454 = vadd.f32 %v346, %v452
    %455 = vst [vmem:[#allocation4] sm:$0xff] %v440
    %456 = vst [vmem:[#allocation4 + $0x8] sm:$0xff] %v441
    %v457 = vlog2.pop %v453
    %v458 = vmul.f32 %v457, 0.6931472
    %v459 = vlog2.pop %v454
    %v460 = vmul.f32 %v459, 0.6931472
    %461 = vst [vmem:[#allocation6] sm:$0xff] %v458
    %462 = vst [vmem:[#allocation6 + $0x8] sm:$0xff] %v460
    // Predicated region
    $region6: #{flow1d_forward.1} parent=1 // pred_check
      _
    $region7: #{flow1d_forward.1} parent=1 // pred_check_branch
      %464 = sbr.rel (0) target = $region9
    $region8: #{flow1d_forward.1} parent=1 // pred_region
      %466 = vsyncadd [#allocation5], 0
      %s467 = sshll.u32 [#allocation4], 4
      %s468 = int_to_ptr.vmem [resolvable:$true] %s467
      %s469 = sshll.u32 %s2, 4
      %s470 = int_to_ptr.hbm [resolvable:$true] %s469
      %475 = dma.vmem_to_hbm [thread:$0]  %s468, 256, %s470, [#allocation5], 128, 128, 8
    $region9: #{flow1d_forward.1} parent=1 // pred_fallthru
      _
    // Predicated region
    $region10: #{flow1d_forward.1} parent=1 // pred_check
      _
    $region11: #{flow1d_forward.1} parent=1 // pred_check_branch
      %477 = sbr.rel (0) target = $region13
    $region12: #{flow1d_forward.1} parent=1 // pred_region
      %479 = vsyncadd [#allocation7], 0
      %s480 = sshll.u32 [#allocation6], 4
      %s481 = int_to_ptr.vmem [resolvable:$true] %s480
      %s482 = sshll.u32 %s3, 4
      %s483 = int_to_ptr.hbm [resolvable:$true] %s482
      %488 = dma.vmem_to_hbm [thread:$0]  %s481, 256, %s483, [#allocation7], 128, 128, 8
    $region13: #{flow1d_forward.1} parent=1 // pred_fallthru
      _
    // Predicated region
    $region14: #{flow1d_forward.1} parent=1 // pred_check
      _
    $region15: #{flow1d_forward.1} parent=1 // pred_check_branch
      %490 = sbr.rel (0) target = $region17
    $region16: #{flow1d_forward.1} parent=1 // pred_region
      %492 = dma.done [#allocation5], 256
    $region17: #{flow1d_forward.1} parent=1 // pred_fallthru
      _
    // Predicated region
    $region18: #{flow1d_forward.1} parent=1 // pred_check
      _
    $region19: #{flow1d_forward.1} parent=1 // pred_check_branch
      %494 = sbr.rel (0) target = $region21
    $region20: #{flow1d_forward.1} parent=1 // pred_region
      %496 = dma.done [#allocation7], 256
    $region21: #{flow1d_forward.1} parent=1 // pred_fallthru
      _
    %497 = vsyncpa [#allocation5], 1
    %498 = vsyncpa [#allocation7], 1

</llo_original>
